<compile_context>
chip_gen: v5e
topology: v5e:2x2
jax: 0.10.0
libtpu: 0.0.40
codegen_flags: <defaults>
</compile_context>

<pallas_src>
import functools

import jax
import jax.numpy as jnp
import numpy as np
from jax import lax
from jax.experimental import pallas as pl
from jax.experimental.pallas import tpu as pltpu

KERNEL_SIZE = 4
PADDING = 1
STRIDE = 1
EPS = 1e-5
NEG_SLOPE = 0.2


def _round_up(x, m):
    return (x + m - 1) // m * m


# --------------------------------------------------------------------------- #
# Kernel 1: fused-tap conv (single MXU matmul) + single-pass moments
# --------------------------------------------------------------------------- #
def _conv_moments_kernel(xa_ref, xb_ref, w_ref, z_ref, mu_ref, inv_ref,
                         s1_acc, s2_acc, *, offsets, tile_l, wp, wo, lz, count):
    """Grid point (n, c, t).

    xa_ref : [1, Cin_p, TL]       bf16  lane-tile t of the flattened padded input
    xb_ref : [1, Cin_p, HALO128]  bf16  narrow halo following tile t
    w_ref  : [TC_CO, KH*KW*Cin_p] bf16  fused-tap weights
    z_ref  : [1, TC_CO, TL]       bf16  conv output tile (lane-dense)
    mu_ref : [1, TC_CO, 1]        f32   per-channel mean   (written at t == T-1)
    inv_ref: [1, TC_CO, 1]        f32   per-channel rsqrt(var+eps) (written at t == T-1)
    s1_acc : [TC_CO, 1]           f32   VMEM scratch, running sum
    s2_acc : [TC_CO, 1]           f32   VMEM scratch, running sum of squares
    """
    t = pl.program_id(2)

    @pl.when(t == 0)
    def _init():
        s1_acc[...] = jnp.zeros_like(s1_acc)
        s2_acc[...] = jnp.zeros_like(s2_acc)

    # Halo'd window for this lane tile: [Cin_p, TL + HALO128] bf16 (stays in VMEM).
    xcat = jnp.concatenate([xa_ref[0], xb_ref[0]], axis=-1)

    # Stack the 16 shifted slabs along the contraction axis -> one MXU matmul with
    # K = KH*KW*Cin_p (bf16 operands, f32 accumulation).
    xstack = jnp.concatenate([xcat[:, off:off + tile_l] for off in offsets], axis=0)
    z = jnp.dot(w_ref[...], xstack, preferred_element_type=jnp.float32)  # [TC_CO, TL]

    # bf16 intermediate halves the HBM round-trip between pass 1 and pass 2.
    z_ref[0] = z.astype(z_ref.dtype)

    # Single-pass InstanceNorm moments over valid output positions only
    # (mask built in-kernel; wrap-around / tail-padding lanes excluded).
    pos = t * tile_l + lax.broadcasted_iota(jnp.int32, (1, tile_l), 1)
    valid = jnp.logical_and(pos % wp < wo, pos < lz).astype(jnp.float32)   # [1, TL]
    zm = z * valid
    s1_acc[...] += jnp.sum(zm, axis=1, keepdims=True)        # [TC_CO, 1]
    s2_acc[...] += jnp.sum(zm * z, axis=1, keepdims=True)    # [TC_CO, 1]

    @pl.when(t == pl.num_programs(2) - 1)
    def _finalize():
        # TODO(synk): E[x^2]-E[x]^2 in f32 can lose precision for very large spatial
        # extents; switch to a two-pass / Welford scheme if tolerances tighten.
        mean = s1_acc[...] / float(count)
        var = jnp.maximum(s2_acc[...] / float(count) - mean * mean, 0.0)
        mu_ref[0] = mean
        inv_ref[0] = lax.rsqrt(var + EPS)


# --------------------------------------------------------------------------- #
# Kernel 2: normalize + LeakyReLU (lightweight second pass over conv tiles)
# --------------------------------------------------------------------------- #
def _norm_lrelu_kernel(z_ref, mu_ref, inv_ref, y_ref):
    z = z_ref[0].astype(jnp.float32)               # [TC_CO, TL]
    zn = (z - mu_ref[0]) * inv_ref[0]              # broadcast [TC_CO, 1]
    y_ref[0] = jnp.where(zn >= 0, zn, NEG_SLOPE * zn).astype(y_ref.dtype)


# --------------------------------------------------------------------------- #
# Wrapper
# --------------------------------------------------------------------------- #
def disc_cbr_forward(x_nchw, weight, bias=None, *, tile_l=1024, cout_block=256):
    """x: [N, Cin, H, W]; weight: [Cout, Cin, KH, KW] (PyTorch OIHW); bias: [Cout].

    Returns [N, Cout, Ho, Wo] (NCHW), matching disc_CBR.forward.
    NOTE: `bias` is accepted for interface parity but unused — a per-channel bias
    is a mathematical no-op under the following InstanceNorm2d(affine=False)."""
    del bias
    assert STRIDE == 1
    N, Cin, H, W = x_nchw.shape
    Cout = weight.shape[0]
    KH = KW = KERNEL_SIZE
    Hp, Wp = H + 2 * PADDING, W + 2 * PADDING
    Ho = (H + 2 * PADDING - KH) // STRIDE + 1
    Wo = (W + 2 * PADDING - KW) // STRIDE + 1

    # Pad channels to a multiple of 16 so the in-kernel slab stacking is bf16
    # sublane-tile aligned (zero channels contribute nothing to the contraction).
    Cin_p = _round_up(Cin, 16)
    K16 = KH * KW * Cin_p

    # Flattened conv-output length (includes KW-1 wrap-around columns per row that
    # are masked out of the moments and sliced away at the end).
    Lz = Ho * Wp
    halo = (KH - 1) * Wp + (KW - 1)                # max shifted-slab offset
    HALO128 = _round_up(halo, 128)                 # narrow halo block width
    TL = _round_up(max(tile_l, HALO128), HALO128)  # lane tile, multiple of HALO128
    Lp = _round_up(Lz, TL)
    T = Lp // TL
    Lin = _round_up(Lp + HALO128, TL)              # input length incl. halo of last tile

    # Cout tiling: feeds the second TensorCore on v7x at small N and bounds per-tile VMEM.
    if Cout > cout_block and Cout % cout_block == 0 and cout_block % 8 == 0:
        TC_CO = cout_block
    else:
        TC_CO = Cout
    CB = Cout // TC_CO

    # ---- glue (no transposes, no HBM im2col): pad, flatten spatial, cast to bf16 ----
    x_pad = jnp.pad(x_nchw, ((0, 0), (0, 0), (PADDING, PADDING), (PADDING, PADDING)))
    x_flat = x_pad.reshape(N, Cin, Hp * Wp)
    x_flat = jnp.pad(x_flat, ((0, 0), (0, Cin_p - Cin), (0, Lin - Hp * Wp)))
    x_flat = x_flat.astype(jnp.bfloat16)

    # Fused-tap weights: [Cout, KH*KW*Cin_p]; row order (kh,kw,cin) matches xstack.
    w_pad = jnp.pad(weight, ((0, 0), (0, Cin_p - Cin), (0, 0), (0, 0)))
    w2 = jnp.transpose(w_pad, (0, 2, 3, 1)).reshape(Cout, K16).astype(jnp.bfloat16)

    offsets = tuple(kh * Wp + kw for kh in range(KH) for kw in range(KW))
    conv_kernel = functools.partial(_conv_moments_kernel, offsets=offsets, tile_l=TL,
                                    wp=Wp, wo=Wo, lz=Lz, count=Ho * Wo)

    # ---- pass 1: fused conv tiles + per-channel mean / rsqrt(var+eps) -------------
    z, mu, inv = pl.pallas_call(
        conv_kernel,
        out_shape=(jax.ShapeDtypeStruct((N, Cout, Lp), jnp.bfloat16),
                   jax.ShapeDtypeStruct((N, Cout, 1), jnp.float32),
                   jax.ShapeDtypeStruct((N, Cout, 1), jnp.float32)),
        grid_spec=pltpu.PrefetchScalarGridSpec(
            num_scalar_prefetch=0,
            grid=(N, CB, T),
            in_specs=[
                pl.BlockSpec((1, Cin_p, TL), lambda n, c, t: (n, 0, t)),
                pl.BlockSpec((1, Cin_p, HALO128),
                             lambda n, c, t: (n, 0, (t + 1) * (TL // HALO128))),
                pl.BlockSpec((TC_CO, K16), lambda n, c, t: (c, 0)),
            ],
            out_specs=(
                pl.BlockSpec((1, TC_CO, TL), lambda n, c, t: (n, c, t)),
                pl.BlockSpec((1, TC_CO, 1), lambda n, c, t: (n, c, 0)),
                pl.BlockSpec((1, TC_CO, 1), lambda n, c, t: (n, c, 0)),
            ),
            scratch_shapes=[pltpu.VMEM((TC_CO, 1), jnp.float32),
                            pltpu.VMEM((TC_CO, 1), jnp.float32)]),
        compiler_params=pltpu.CompilerParams(
            dimension_semantics=("parallel", "parallel", "arbitrary"),
            vmem_limit_bytes=48 * 1024 * 1024),
    )(x_flat, x_flat, w2)

    # ---- pass 2: normalize + LeakyReLU over the bf16 conv tiles -------------------
    y_full = pl.pallas_call(
        _norm_lrelu_kernel,
        out_shape=jax.ShapeDtypeStruct((N, Cout, Lp), x_nchw.dtype),
        grid_spec=pltpu.PrefetchScalarGridSpec(
            num_scalar_prefetch=0,
            grid=(N, CB, T),
            in_specs=[
                pl.BlockSpec((1, TC_CO, TL), lambda n, c, t: (n, c, t)),
                pl.BlockSpec((1, TC_CO, 1), lambda n, c, t: (n, c, 0)),
                pl.BlockSpec((1, TC_CO, 1), lambda n, c, t: (n, c, 0)),
            ],
            out_specs=pl.BlockSpec((1, TC_CO, TL), lambda n, c, t: (n, c, t)),
        ),
        compiler_params=pltpu.CompilerParams(
            dimension_semantics=("parallel", "parallel", "parallel"),
            vmem_limit_bytes=48 * 1024 * 1024),
    )(z, mu, inv)

    # Drop wrap-around columns / tail padding.  Result is already NCHW.
    y = y_full[:, :, :Lz].reshape(N, Cout, Ho, Wp)[:, :, :, :Wo]
    return y


# --------------------------------------------------------------------------- #
# Pure-JAX reference (PyTorch semantics, f32) for the correctness check
# --------------------------------------------------------------------------- #
def _reference(x_nchw, weight, bias):
    y = lax.conv_general_dilated(
        x_nchw.astype(jnp.float32), weight.astype(jnp.float32),
        window_strides=(STRIDE, STRIDE),
        padding=((PADDING, PADDING), (PADDING, PADDING)),
        dimension_numbers=("NCHW", "OIHW", "NCHW"),
    ) + bias.reshape(1, -1, 1, 1)
    mean = jnp.mean(y, axis=(2, 3), keepdims=True)
    var = jnp.mean((y - mean) ** 2, axis=(2, 3), keepdims=True)
    y = (y - mean) * lax.rsqrt(var + EPS)
    return jnp.where(y >= 0, y, NEG_SLOPE * y)


if __name__ == "__main__":
    key = jax.random.PRNGKey(0)
    k_x, k_w, k_b = jax.random.split(key, 3)

    N, Cin, H, W = 2, 4, 16, 16
    Cout = 8

    x = jax.random.normal(k_x, (N, Cin, H, W), dtype=jnp.float32)
    fan_in = Cin * KERNEL_SIZE * KERNEL_SIZE
    bound = 1.0 / np.sqrt(fan_in)
    weight = jax.random.uniform(k_w, (Cout, Cin, KERNEL_SIZE, KERNEL_SIZE),
                                minval=-bound, maxval=bound, dtype=jnp.float32)
    bias = jax.random.uniform(k_b, (Cout,), minval=-bound, maxval=bound,
                              dtype=jnp.float32)

    # tile_l=256 -> 2 lane tiles at this shape, exercising the moment accumulation
    # and the t == T-1 finalize path.
    out = disc_cbr_forward(x, weight, bias, tile_l=256)
    out = jax.block_until_ready(out)

    ref = jax.block_until_ready(_reference(x, weight, bias))
    assert out.shape == ref.shape == (N, Cout, H - 1, W - 1)
    # bf16 MXU operands + bf16 intermediate (f32 accumulation/moments) -> compare
    # against the f32 reference with a bf16-appropriate tolerance.
    np.testing.assert_allclose(np.asarray(out), np.asarray(ref), atol=2e-2, rtol=2e-2)

    print("KERNEL_OK")
</pallas_src>

<mosaic_0001>
module attributes {stable_mosaic.version = 11 : i64} {
  func.func @_conv_moments_kernel(%arg0: i32, %arg1: i32, %arg2: i32, %arg3: memref<1x16x256xbf16, #tpu.memory_space<vmem>>, %arg4: memref<1x16x128xbf16, #tpu.memory_space<vmem>>, %arg5: memref<8x256xbf16, #tpu.memory_space<vmem>>, %arg6: memref<1x8x256xbf16, #tpu.memory_space<vmem>>, %arg7: memref<1x8x1xf32, #tpu.memory_space<vmem>>, %arg8: memref<1x8x1xf32, #tpu.memory_space<vmem>>, %arg9: memref<8x1xf32, #tpu.memory_space<vmem>>, %arg10: memref<8x1xf32, #tpu.memory_space<vmem>>) attributes {dimension_semantics = [#tpu.dimension_semantics<parallel>, #tpu.dimension_semantics<parallel>, #tpu.dimension_semantics<arbitrary>], iteration_bounds = array<i64: 2, 1, 2>, scalar_prefetch = 0 : i64, scratch_operands = 2 : i64, tpu.core_type = #tpu.core_type<tc>, window_params = [{transform_indices = @transform_0, window_bounds = array<i64: 1, 16, 256>}, {transform_indices = @transform_1, window_bounds = array<i64: 1, 16, 128>}, {transform_indices = @transform_2, window_bounds = array<i64: 8, 256>}, {transform_indices = @transform_3, window_bounds = array<i64: 1, 8, 256>}, {transform_indices = @transform_4, window_bounds = array<i64: 1, 8, 1>}, {transform_indices = @transform_5, window_bounds = array<i64: 1, 8, 1>}]} {
    %c0_i32 = arith.constant 0 : i32
    %0 = arith.cmpi eq, %arg2, %c0_i32 : i32
    %1 = arith.extui %0 : i1 to i32
    %c0_i32_0 = arith.constant 0 : i32
    %2 = arith.cmpi ne, %1, %c0_i32_0 : i32
    scf.if %2 {
      %cst_27 = arith.constant 0.000000e+00 : f32
      %74 = vector.broadcast %cst_27 : f32 to vector<8x1xf32>
      %c0_28 = arith.constant 0 : index
      %c0_29 = arith.constant 0 : index
      %75 = vector.load %arg9[%c0_28, %c0_29] : memref<8x1xf32, #tpu.memory_space<vmem>>, vector<8x1xf32>
      tpu.vector_store %arg9[%c0_28, %c0_29], %74 {strides = array<i32>} : memref<8x1xf32, #tpu.memory_space<vmem>>, vector<8x1xf32>,
      %cst_30 = arith.constant 0.000000e+00 : f32
      %76 = vector.broadcast %cst_30 : f32 to vector<8x1xf32>
      %c0_31 = arith.constant 0 : index
      %c0_32 = arith.constant 0 : index
      %77 = vector.load %arg10[%c0_31, %c0_32] : memref<8x1xf32, #tpu.memory_space<vmem>>, vector<8x1xf32>
      tpu.vector_store %arg10[%c0_31, %c0_32], %76 {strides = array<i32>} : memref<8x1xf32, #tpu.memory_space<vmem>>, vector<8x1xf32>,
    } else {
    }
    %c0 = arith.constant 0 : index
    %c0_1 = arith.constant 0 : index
    %c0_2 = arith.constant 0 : index
    %3 = vector.load %arg3[%c0, %c0_1, %c0_2] : memref<1x16x256xbf16, #tpu.memory_space<vmem>>, vector<1x16x256xbf16>
    %4 = vector.shape_cast %3 : vector<1x16x256xbf16> to vector<16x256xbf16>
    %c0_3 = arith.constant 0 : index
    %c0_4 = arith.constant 0 : index
    %c0_5 = arith.constant 0 : index
    %5 = vector.load %arg4[%c0_3, %c0_4, %c0_5] : memref<1x16x128xbf16, #tpu.memory_space<vmem>>, vector<1x16x128xbf16>
    %6 = vector.shape_cast %5 : vector<1x16x128xbf16> to vector<16x128xbf16>
    %7 = tpu.concatenate %4, %6 in 1 : vector<16x256xbf16>, vector<16x128xbf16> -> vector<16x384xbf16>
    %8 = vector.extract_strided_slice %7 {offsets = [0, 0], sizes = [16, 256], strides = [1, 1]} : vector<16x384xbf16> to vector<16x256xbf16>
    %9 = vector.extract_strided_slice %7 {offsets = [0, 1], sizes = [16, 256], strides = [1, 1]} : vector<16x384xbf16> to vector<16x256xbf16>
    %10 = vector.extract_strided_slice %7 {offsets = [0, 2], sizes = [16, 256], strides = [1, 1]} : vector<16x384xbf16> to vector<16x256xbf16>
    %11 = vector.extract_strided_slice %7 {offsets = [0, 3], sizes = [16, 256], strides = [1, 1]} : vector<16x384xbf16> to vector<16x256xbf16>
    %12 = vector.extract_strided_slice %7 {offsets = [0, 18], sizes = [16, 256], strides = [1, 1]} : vector<16x384xbf16> to vector<16x256xbf16>
    %13 = vector.extract_strided_slice %7 {offsets = [0, 19], sizes = [16, 256], strides = [1, 1]} : vector<16x384xbf16> to vector<16x256xbf16>
    %14 = vector.extract_strided_slice %7 {offsets = [0, 20], sizes = [16, 256], strides = [1, 1]} : vector<16x384xbf16> to vector<16x256xbf16>
    %15 = vector.extract_strided_slice %7 {offsets = [0, 21], sizes = [16, 256], strides = [1, 1]} : vector<16x384xbf16> to vector<16x256xbf16>
    %16 = vector.extract_strided_slice %7 {offsets = [0, 36], sizes = [16, 256], strides = [1, 1]} : vector<16x384xbf16> to vector<16x256xbf16>
    %17 = vector.extract_strided_slice %7 {offsets = [0, 37], sizes = [16, 256], strides = [1, 1]} : vector<16x384xbf16> to vector<16x256xbf16>
    %18 = vector.extract_strided_slice %7 {offsets = [0, 38], sizes = [16, 256], strides = [1, 1]} : vector<16x384xbf16> to vector<16x256xbf16>
    %19 = vector.extract_strided_slice %7 {offsets = [0, 39], sizes = [16, 256], strides = [1, 1]} : vector<16x384xbf16> to vector<16x256xbf16>
    %20 = vector.extract_strided_slice %7 {offsets = [0, 54], sizes = [16, 256], strides = [1, 1]} : vector<16x384xbf16> to vector<16x256xbf16>
    %21 = vector.extract_strided_slice %7 {offsets = [0, 55], sizes = [16, 256], strides = [1, 1]} : vector<16x384xbf16> to vector<16x256xbf16>
    %22 = vector.extract_strided_slice %7 {offsets = [0, 56], sizes = [16, 256], strides = [1, 1]} : vector<16x384xbf16> to vector<16x256xbf16>
    %23 = vector.extract_strided_slice %7 {offsets = [0, 57], sizes = [16, 256], strides = [1, 1]} : vector<16x384xbf16> to vector<16x256xbf16>
    %24 = tpu.concatenate %8, %9, %10, %11, %12, %13, %14, %15, %16, %17, %18, %19, %20, %21, %22, %23 in 0 : vector<16x256xbf16>, vector<16x256xbf16>, vector<16x256xbf16>, vector<16x256xbf16>, vector<16x256xbf16>, vector<16x256xbf16>, vector<16x256xbf16>, vector<16x256xbf16>, vector<16x256xbf16>, vector<16x256xbf16>, vector<16x256xbf16>, vector<16x256xbf16>, vector<16x256xbf16>, vector<16x256xbf16>, vector<16x256xbf16>, vector<16x256xbf16> -> vector<256x256xbf16>
    %c0_6 = arith.constant 0 : index
    %c0_7 = arith.constant 0 : index
    %25 = vector.load %arg5[%c0_6, %c0_7] : memref<8x256xbf16, #tpu.memory_space<vmem>>, vector<8x256xbf16>
    %cst = arith.constant dense<0.000000e+00> : vector<8x256xf32>
    %26 = tpu.matmul %25, %24, %cst {dimension_numbers = #tpu.dot_dimension_numbers<[1], [0], [0], [1], [0, 0, 1, 1], [], []>} : vector<8x256xbf16>, vector<256x256xbf16>, vector<8x256xf32> -> vector<8x256xf32>
    %27 = arith.truncf %26 : vector<8x256xf32> to vector<8x256xbf16>
    %c0_8 = arith.constant 0 : index
    %c0_9 = arith.constant 0 : index
    %c0_10 = arith.constant 0 : index
    %28 = vector.load %arg6[%c0_8, %c0_9, %c0_10] : memref<1x8x256xbf16, #tpu.memory_space<vmem>>, vector<1x8x256xbf16>
    %29 = vector.shape_cast %28 : vector<1x8x256xbf16> to vector<8x256xbf16>
    %30 = vector.shape_cast %27 : vector<8x256xbf16> to vector<1x8x256xbf16>
    tpu.vector_store %arg6[%c0_8, %c0_9, %c0_10], %30 {strides = array<i32>} : memref<1x8x256xbf16, #tpu.memory_space<vmem>>, vector<1x8x256xbf16>,
    %c256_i32 = arith.constant 256 : i32
    %31 = arith.muli %arg2, %c256_i32 : i32
    %32 = tpu.iota {dimensions = array<i32: 1>} : vector<1x256xi32>
    %33 = vector.broadcast %31 : i32 to vector<1x256xi32>
    %34 = arith.addi %33, %32 : vector<1x256xi32>
    %c18_i32 = arith.constant 18 : i32
    %c0_i32_11 = arith.constant 0 : i32
    %35 = arith.cmpi eq, %c18_i32, %c0_i32_11 : i32
    %c1_i32 = arith.constant 1 : i32
    %36 = arith.select %35, %c1_i32, %c18_i32 : i32
    %37 = vector.broadcast %36 : i32 to vector<1x256xi32>
    %38 = arith.remsi %34, %37 : vector<1x256xi32>
    %c0_i32_12 = arith.constant 0 : i32
    %39 = vector.broadcast %c0_i32_12 : i32 to vector<1x256xi32>
    %40 = arith.cmpi ne, %38, %39 : vector<1x256xi32>
    %c0_i32_13 = arith.constant 0 : i32
    %41 = vector.broadcast %c0_i32_13 : i32 to vector<1x256xi32>
    %42 = arith.cmpi slt, %38, %41 : vector<1x256xi32>
    %c0_i32_14 = arith.constant 0 : i32
    %43 = arith.cmpi slt, %36, %c0_i32_14 : i32
    %44 = vector.broadcast %43 : i1 to vector<1x256xi1>
    %45 = vector.broadcast %44 : vector<1x256xi1> to vector<1x256xi1>
    %46 = arith.xori %42, %45 : vector<1x256xi1>
    %47 = arith.andi %46, %40 : vector<1x256xi1>
    %48 = vector.broadcast %36 : i32 to vector<1x256xi32>
    %49 = arith.addi %38, %48 : vector<1x256xi32>
    %50 = arith.select %47, %49, %38 : vector<1x256xi1>, vector<1x256xi32>
    %c15_i32 = arith.constant 15 : i32
    %51 = vector.broadcast %c15_i32 : i32 to vector<1x256xi32>
    %52 = arith.cmpi slt, %50, %51 : vector<1x256xi32>
    %c270_i32 = arith.constant 270 : i32
    %53 = vector.broadcast %c270_i32 : i32 to vector<1x256xi32>
    %54 = arith.cmpi slt, %34, %53 : vector<1x256xi32>
    %55 = arith.andi %52, %54 : vector<1x256xi1>
    %56 = arith.extui %55 : vector<1x256xi1> to vector<1x256xi32>
    %57 = arith.sitofp %56 : vector<1x256xi32> to vector<1x256xf32>
    %58 = vector.broadcast %57 : vector<1x256xf32> to vector<8x256xf32>
    %59 = arith.mulf %26, %58 : vector<8x256xf32>
    %c0_15 = arith.constant 0 : index
    %c0_16 = arith.constant 0 : index
    %60 = vector.load %arg9[%c0_15, %c0_16] : memref<8x1xf32, #tpu.memory_space<vmem>>, vector<8x1xf32>
    %cst_17 = arith.constant dense<0.000000e+00> : vector<8xf32>
    %61 = vector.multi_reduction <add>, %59, %cst_17 [1] : vector<8x256xf32> to vector<8xf32>
    %62 = vector.shape_cast %61 : vector<8xf32> to vector<8x1xf32>
    %63 = arith.addf %60, %62 : vector<8x1xf32>
    %c0_18 = arith.constant 0 : index
    %c0_19 = arith.constant 0 : index
    %64 = vector.load %arg9[%c0_18, %c0_19] : memref<8x1xf32, #tpu.memory_space<vmem>>, vector<8x1xf32>
    tpu.vector_store %arg9[%c0_18, %c0_19], %63 {strides = array<i32>} : memref<8x1xf32, #tpu.memory_space<vmem>>, vector<8x1xf32>,
    %c0_20 = arith.constant 0 : index
    %c0_21 = arith.constant 0 : index
    %65 = vector.load %arg10[%c0_20, %c0_21] : memref<8x1xf32, #tpu.memory_space<vmem>>, vector<8x1xf32>
    %66 = arith.mulf %59, %26 : vector<8x256xf32>
    %cst_22 = arith.constant dense<0.000000e+00> : vector<8xf32>
    %67 = vector.multi_reduction <add>, %66, %cst_22 [1] : vector<8x256xf32> to vector<8xf32>
    %68 = vector.shape_cast %67 : vector<8xf32> to vector<8x1xf32>
    %69 = arith.addf %65, %68 : vector<8x1xf32>
    %c0_23 = arith.constant 0 : index
    %c0_24 = arith.constant 0 : index
    %70 = vector.load %arg10[%c0_23, %c0_24] : memref<8x1xf32, #tpu.memory_space<vmem>>, vector<8x1xf32>
    tpu.vector_store %arg10[%c0_23, %c0_24], %69 {strides = array<i32>} : memref<8x1xf32, #tpu.memory_space<vmem>>, vector<8x1xf32>,
    %c1_i32_25 = arith.constant 1 : i32
    %71 = arith.cmpi eq, %arg2, %c1_i32_25 : i32
    %72 = arith.extui %71 : i1 to i32
    %c0_i32_26 = arith.constant 0 : i32
    %73 = arith.cmpi ne, %72, %c0_i32_26 : i32
    scf.if %73 {
      %c0_27 = arith.constant 0 : index
      %c0_28 = arith.constant 0 : index
      %74 = vector.load %arg9[%c0_27, %c0_28] : memref<8x1xf32, #tpu.memory_space<vmem>>, vector<8x1xf32>
      %cst_29 = arith.constant 2.250000e+02 : f32
      %75 = vector.broadcast %cst_29 : f32 to vector<8x1xf32>
      %76 = arith.divf %74, %75 : vector<8x1xf32>
      %c0_30 = arith.constant 0 : index
      %c0_31 = arith.constant 0 : index
      %77 = vector.load %arg10[%c0_30, %c0_31] : memref<8x1xf32, #tpu.memory_space<vmem>>, vector<8x1xf32>
      %cst_32 = arith.constant 2.250000e+02 : f32
      %78 = vector.broadcast %cst_32 : f32 to vector<8x1xf32>
      %79 = arith.divf %77, %78 : vector<8x1xf32>
      %80 = arith.mulf %76, %76 : vector<8x1xf32>
      %81 = arith.subf %79, %80 : vector<8x1xf32>
      %cst_33 = arith.constant 0.000000e+00 : f32
      %82 = vector.broadcast %cst_33 : f32 to vector<8x1xf32>
      %83 = arith.maximumf %81, %82 : vector<8x1xf32>
      %c0_34 = arith.constant 0 : index
      %c0_35 = arith.constant 0 : index
      %c0_36 = arith.constant 0 : index
      %84 = vector.load %arg7[%c0_34, %c0_35, %c0_36] : memref<1x8x1xf32, #tpu.memory_space<vmem>>, vector<1x8x1xf32>
      %85 = vector.shape_cast %84 : vector<1x8x1xf32> to vector<8x1xf32>
      %86 = vector.shape_cast %76 : vector<8x1xf32> to vector<1x8x1xf32>
      tpu.vector_store %arg7[%c0_34, %c0_35, %c0_36], %86 {strides = array<i32>} : memref<1x8x1xf32, #tpu.memory_space<vmem>>, vector<1x8x1xf32>,
      %cst_37 = arith.constant 9.99999974E-6 : f32
      %87 = vector.broadcast %cst_37 : f32 to vector<8x1xf32>
      %88 = arith.addf %83, %87 : vector<8x1xf32>
      %89 = math.rsqrt %88 : vector<8x1xf32>
      %c0_38 = arith.constant 0 : index
      %c0_39 = arith.constant 0 : index
      %c0_40 = arith.constant 0 : index
      %90 = vector.load %arg8[%c0_38, %c0_39, %c0_40] : memref<1x8x1xf32, #tpu.memory_space<vmem>>, vector<1x8x1xf32>
      %91 = vector.shape_cast %90 : vector<1x8x1xf32> to vector<8x1xf32>
      %92 = vector.shape_cast %89 : vector<8x1xf32> to vector<1x8x1xf32>
      tpu.vector_store %arg8[%c0_38, %c0_39, %c0_40], %92 {strides = array<i32>} : memref<1x8x1xf32, #tpu.memory_space<vmem>>, vector<1x8x1xf32>,
    } else {
    }
    return
  }
  func.func @transform_0(%arg0: i32, %arg1: i32, %arg2: i32) -> (i32, i32, i32) {
    %c0_i32 = arith.constant 0 : i32
    %c0_i32_0 = arith.constant 0 : i32
    return %arg0, %c0_i32, %arg2 : i32, i32, i32
  }
  func.func @transform_1(%arg0: i32, %arg1: i32, %arg2: i32) -> (i32, i32, i32) {
    %c1_i32 = arith.constant 1 : i32
    %0 = arith.addi %arg2, %c1_i32 : i32
    %c2_i32 = arith.constant 2 : i32
    %1 = arith.muli %0, %c2_i32 : i32
    %c0_i32 = arith.constant 0 : i32
    %c0_i32_0 = arith.constant 0 : i32
    return %arg0, %c0_i32, %1 : i32, i32, i32
  }
  func.func @transform_2(%arg0: i32, %arg1: i32, %arg2: i32) -> (i32, i32) {
    %c0_i32 = arith.constant 0 : i32
    %c0_i32_0 = arith.constant 0 : i32
    return %arg1, %c0_i32 : i32, i32
  }
  func.func @transform_3(%arg0: i32, %arg1: i32, %arg2: i32) -> (i32, i32, i32) {
    %c0_i32 = arith.constant 0 : i32
    return %arg0, %arg1, %arg2 : i32, i32, i32
  }
  func.func @transform_4(%arg0: i32, %arg1: i32, %arg2: i32) -> (i32, i32, i32) {
    %c0_i32 = arith.constant 0 : i32
    %c0_i32_0 = arith.constant 0 : i32
    return %arg0, %arg1, %c0_i32 : i32, i32, i32
  }
  func.func @transform_5(%arg0: i32, %arg1: i32, %arg2: i32) -> (i32, i32, i32) {
    %c0_i32 = arith.constant 0 : i32
    %c0_i32_0 = arith.constant 0 : i32
    return %arg0, %arg1, %c0_i32 : i32, i32, i32
  }
}

</mosaic_0001>

<llo_original>
// kernel: tpu_custom_call.1
$region0: #{tpu_custom_call.1}
  #allocation0 [shape = 'u32[]', space=smem, size = 0x4, offset = 0x4, fixed_abs, tag = 'smem constant byte address 0x4 - core index']
  #allocation1 [shape = 'u32[72,128]{1,0:T(1,128)}', space=vmem, size = 0x9000, scoped, tag = 'internal scratch']
  #allocation2 [shape = 'f32[8,1]{1,0:T(8,128)}', space=vmem, size = 0x1000, scoped, tag = 'scratch operand']
  #allocation3 [shape = 'f32[8,1]{1,0:T(8,128)}', space=vmem, size = 0x1000, scoped, tag = 'scratch operand']
  %s0 = inlined_call_operand.hbm [shape: bf16[2,16,768], index: 0, kind: input, shape index: {}]
  %s1 = inlined_call_operand.hbm [shape: bf16[2,16,768], index: 1, kind: input, shape index: {}]
  %s2 = inlined_call_operand.hbm [shape: bf16[8,256], index: 2, kind: input, shape index: {}]
  %s3 = inlined_call_operand.hbm [shape: bf16[2,8,512], index: 3, kind: output, shape index: {0}]
  %s4 = inlined_call_operand.vmem [shape: f32[2,8,1], index: 4, kind: output, shape index: {1}]
  %s5 = inlined_call_operand.vmem [shape: f32[2,8,1], index: 5, kind: output, shape index: {2}]
  %6 = xla_tuple %s3, %s4, %s5
  %s7 = sld [smem:[#allocation0]]
  $region81: #{tpu_custom_call.1} parent=0
    _
  %s9 = ssub.s32 1, %s7
  %s10 = scalar_select 0, %s9, %s7
  $region1: #{tpu_custom_call.1} parent=0
    #allocation4 [shape = 'u8[16384]{0}', space=vmem, size = 0x4000, scoped, tag = 'input window, operand 0']
    #allocation5 [shape = 's32[2]{0}', space=sflag, size = 0x8, scoped, tag = 'scoped memory for tpu_custom_call.1']
    #allocation6 [shape = 's32[2]{0}', space=sflag, size = 0x8, scoped, tag = 'scoped memory for tpu_custom_call.1']
    #allocation7 [shape = 'u8[8192]{0}', space=vmem, size = 0x2000, scoped, tag = 'input window, operand 1']
    #allocation8 [shape = 's32[2]{0}', space=sflag, size = 0x8, scoped, tag = 'scoped memory for tpu_custom_call.1']
    #allocation9 [shape = 'u8[4096]{0}', space=vmem, size = 0x1000, scoped, tag = 'input window, operand 2, single buffered']
    #allocation10 [shape = 'u8[8192]{0}', space=vmem, size = 0x2000, scoped, tag = 'output window, operand 0']
    %11 = vsyncpa [#allocation5], 0
    %s12 = scalar_lea.sflag [#allocation5], 1
    %13 = vsyncpa %s12, 0
    %14 = vsyncpa [#allocation8], 0
    %s15 = scalar_lea.sflag [#allocation8], 1
    %16 = vsyncpa %s15, 0
    %17 = vsyncpa [#allocation6], 0
    %s18 = scalar_lea.sflag [#allocation6], 1
    %19 = vsyncpa %s18, 0
    loop: start=0, step=1, limit=6
    $region2: #{tpu_custom_call.1} parent=1 // loop_pre_header
      _
    $region3: #{tpu_custom_call.1} parent=1 // loop_header
      %s21 = sphi 0, %s25
      %p22 = scmp.ge.s32.totalorder %s21, 6
      %s28 = sphi 0, %s47
      %s29 = sphi 0, %s43
      %s30 = sphi 0, %s39
      %s31 = sphi 0, %s28
      %s32 = sphi 0, %s29
      %s33 = sphi 0, %s30
      %s34 = sphi 0, %s31
      %s35 = sphi 0, %s32
      %s36 = sphi 0, %s33
      %s52 = sphi 0, %s54
      %s55 = sphi 0, %s52
      %s56 = sphi 0, %s55
      %s72 = sphi 0, %s56
      %s84 = sphi 0, %s86
      %s87 = sphi 0, %s84
      %s88 = sphi 0, %s87
      %s104 = sphi 0, %s88
      %s110 = sphi 0, %s112
      %s113 = sphi 0, %s110
      %s114 = sphi 0, %s113
      %s130 = sphi 0, %s114
      %s140 = sphi 0, %s142
      %s143 = sphi 0, %s140
      %s144 = sphi 0, %s143
      %s160 = sphi 0, %s144
      %s168 = sphi 0, %s170
      %s171 = sphi 0, %s168
      %s172 = sphi 0, %s171
      %s188 = sphi 0, %s172
      %s196 = sphi 0, %s198
      %s199 = sphi 0, %s196
      %s200 = sphi 0, %s199
      %s216 = sphi 0, %s200
    $region4: #{tpu_custom_call.1} parent=1 // loop_header_branch
      %24 = sbr.rel (%p22) target = $region8
    $region5: #{tpu_custom_call.1} parent=1 // loop_body
      %s26 = ssub.s32 %s21, 1
      %s27 = ssub.s32 %s21, 2
      %s37 = sadd.s32 1, %s30
      %p38 = scmp.ge.s32.totalorder %s37, 2
      %s39 = scalar_select %p38, 0, %s37
      %s40 = sadd.s32 1, %s29
      %s41 = scalar_select %p38, %s40, %s29
      %p42 = scmp.ge.s32.totalorder %s41, 1
      %s43 = scalar_select %p42, 0, %s41
      %s44 = sadd.s32 1, %s28
      %s45 = scalar_select %p42, %s44, %s28
      %p46 = scmp.ge.s32.totalorder %s45, 2
      %s47 = scalar_select %p46, 0, %s45
      %s48 = ssub.s32 %s28, %s47
      %s49 = ssub.s32 %s30, %s39
      %s50 = sor.u32 %s48, %s49
      %p51 = scmp.eq.s32.totalorder %s50, 0
      %s53 = sadd.s32 %s52, 1
      %s54 = scalar_select %p51, %s52, %s53
      %p57 = pneg %p51
      %p58 = scmp.eq.s32.totalorder %s21, 3
      %p59 = por %p57, %p58
      %p60 = scmp.ne.s32.totalorder %s52, %s55
      %p61 = scmp.eq.s32.totalorder %s21, 0
      %p62 = por %p60, %p61
      %p63 = scmp.ne.s32.totalorder %s52, %s55
      %p64 = scmp.eq.s32.totalorder %s26, 3
      %p65 = por %p63, %p64
      %p66 = scmp.ne.s32.totalorder %s55, %s56
      %p67 = scmp.eq.s32.totalorder %s26, 0
      %p68 = por %p66, %p67
      %p69 = scmp.ne.s32.totalorder %s55, %s56
      %p70 = scmp.eq.s32.totalorder %s27, 3
      %p71 = por %p69, %p70
      %p73 = scmp.ne.s32.totalorder %s56, %s72
      %p74 = scmp.eq.s32.totalorder %s27, 0
      %p75 = por %p73, %p74
      %s76 = sadd.s32 %s30, 1
      %s77 = smul.u32 %s76, 2
      %s78 = sadd.s32 %s39, 1
      %s79 = smul.u32 %s78, 2
      %s80 = ssub.s32 %s28, %s47
      %s81 = ssub.s32 %s77, %s79
      %s82 = sor.u32 %s80, %s81
      %p83 = scmp.eq.s32.totalorder %s82, 0
      %s85 = sadd.s32 %s84, 1
      %s86 = scalar_select %p83, %s84, %s85
      %p89 = pneg %p83
      %p90 = scmp.eq.s32.totalorder %s21, 3
      %p91 = por %p89, %p90
      %p92 = scmp.ne.s32.totalorder %s84, %s87
      %p93 = scmp.eq.s32.totalorder %s21, 0
      %p94 = por %p92, %p93
      %p95 = scmp.ne.s32.totalorder %s84, %s87
      %p96 = scmp.eq.s32.totalorder %s26, 3
      %p97 = por %p95, %p96
      %p98 = scmp.ne.s32.totalorder %s87, %s88
      %p99 = scmp.eq.s32.totalorder %s26, 0
      %p100 = por %p98, %p99
      %p101 = scmp.ne.s32.totalorder %s87, %s88
      %p102 = scmp.eq.s32.totalorder %s27, 3
      %p103 = por %p101, %p102
      %p105 = scmp.ne.s32.totalorder %s88, %s104
      %p106 = scmp.eq.s32.totalorder %s27, 0
      %p107 = por %p105, %p106
      %s108 = ssub.s32 %s29, %s43
      %p109 = scmp.eq.s32.totalorder %s108, 0
      %s111 = sadd.s32 %s110, 1
      %s112 = scalar_select %p109, %s110, %s111
      %p115 = pneg %p109
      %p116 = scmp.eq.s32.totalorder %s21, 3
      %p117 = por %p115, %p116
      %p118 = scmp.ne.s32.totalorder %s110, %s113
      %p119 = scmp.eq.s32.totalorder %s21, 0
      %p120 = por %p118, %p119
      %p121 = scmp.ne.s32.totalorder %s110, %s113
      %p122 = scmp.eq.s32.totalorder %s26, 3
      %p123 = por %p121, %p122
      %p124 = scmp.ne.s32.totalorder %s113, %s114
      %p125 = scmp.eq.s32.totalorder %s26, 0
      %p126 = por %p124, %p125
      %p127 = scmp.ne.s32.totalorder %s113, %s114
      %p128 = scmp.eq.s32.totalorder %s27, 3
      %p129 = por %p127, %p128
      %p131 = scmp.ne.s32.totalorder %s114, %s130
      %p132 = scmp.eq.s32.totalorder %s27, 0
      %p133 = por %p131, %p132
      %s134 = ssub.s32 %s28, %s47
      %s135 = ssub.s32 %s29, %s43
      %s136 = sor.u32 %s134, %s135
      %s137 = ssub.s32 %s30, %s39
      %s138 = sor.u32 %s136, %s137
      %p139 = scmp.eq.s32.totalorder %s138, 0
      %s141 = sadd.s32 %s140, 1
      %s142 = scalar_select %p139, %s140, %s141
      %p145 = pneg %p139
      %p146 = scmp.eq.s32.totalorder %s21, 3
      %p147 = por %p145, %p146
      %p148 = scmp.ne.s32.totalorder %s140, %s143
      %p149 = scmp.eq.s32.totalorder %s21, 0
      %p150 = por %p148, %p149
      %p151 = scmp.ne.s32.totalorder %s140, %s143
      %p152 = scmp.eq.s32.totalorder %s26, 3
      %p153 = por %p151, %p152
      %p154 = scmp.ne.s32.totalorder %s143, %s144
      %p155 = scmp.eq.s32.totalorder %s26, 0
      %p156 = por %p154, %p155
      %p157 = scmp.ne.s32.totalorder %s143, %s144
      %p158 = scmp.eq.s32.totalorder %s27, 3
      %p159 = por %p157, %p158
      %p161 = scmp.ne.s32.totalorder %s144, %s160
      %p162 = scmp.eq.s32.totalorder %s27, 0
      %p163 = por %p161, %p162
      %s164 = ssub.s32 %s28, %s47
      %s165 = ssub.s32 %s29, %s43
      %s166 = sor.u32 %s164, %s165
      %p167 = scmp.eq.s32.totalorder %s166, 0
      %s169 = sadd.s32 %s168, 1
      %s170 = scalar_select %p167, %s168, %s169
      %p173 = pneg %p167
      %p174 = scmp.eq.s32.totalorder %s21, 3
      %p175 = por %p173, %p174
      %p176 = scmp.ne.s32.totalorder %s168, %s171
      %p177 = scmp.eq.s32.totalorder %s21, 0
      %p178 = por %p176, %p177
      %p179 = scmp.ne.s32.totalorder %s168, %s171
      %p180 = scmp.eq.s32.totalorder %s26, 3
      %p181 = por %p179, %p180
      %p182 = scmp.ne.s32.totalorder %s171, %s172
      %p183 = scmp.eq.s32.totalorder %s26, 0
      %p184 = por %p182, %p183
      %p185 = scmp.ne.s32.totalorder %s171, %s172
      %p186 = scmp.eq.s32.totalorder %s27, 3
      %p187 = por %p185, %p186
      %p189 = scmp.ne.s32.totalorder %s172, %s188
      %p190 = scmp.eq.s32.totalorder %s27, 0
      %p191 = por %p189, %p190
      %s192 = ssub.s32 %s28, %s47
      %s193 = ssub.s32 %s29, %s43
      %s194 = sor.u32 %s192, %s193
      %p195 = scmp.eq.s32.totalorder %s194, 0
      %s197 = sadd.s32 %s196, 1
      %s198 = scalar_select %p195, %s196, %s197
      %p201 = pneg %p195
      %p202 = scmp.eq.s32.totalorder %s21, 3
      %p203 = por %p201, %p202
      %p204 = scmp.ne.s32.totalorder %s196, %s199
      %p205 = scmp.eq.s32.totalorder %s21, 0
      %p206 = por %p204, %p205
      %p207 = scmp.ne.s32.totalorder %s196, %s199
      %p208 = scmp.eq.s32.totalorder %s26, 3
      %p209 = por %p207, %p208
      %p210 = scmp.ne.s32.totalorder %s199, %s200
      %p211 = scmp.eq.s32.totalorder %s26, 0
      %p212 = por %p210, %p211
      %p213 = scmp.ne.s32.totalorder %s199, %s200
      %p214 = scmp.eq.s32.totalorder %s27, 3
      %p215 = por %p213, %p214
      %p217 = scmp.ne.s32.totalorder %s200, %s216
      %p218 = scmp.eq.s32.totalorder %s27, 0
      %p219 = por %p217, %p218
      %p220 = scmp.le.s32.totalorder 1, %s21
      %p221 = scmp.lt.s32.totalorder %s21, 5
      %p222 = pnand %p220, %p221
      %p223 = pneg %p222
      // Predicated region
      $region9: #{tpu_custom_call.1} parent=5 // pred_check
        _
      $region10: #{tpu_custom_call.1} parent=5 // pred_check_branch
        %225 = sbr.rel (%p222) target = $region12
      $region11: #{tpu_custom_call.1} parent=5 // pred_region
        %s226 = ssub.s32 %s21, 1
        // Predicated region
        $region13: #{tpu_custom_call.1} parent=11 // pred_check
          %p227 = pneg %p126
        $region14: #{tpu_custom_call.1} parent=11 // pred_check_branch
          %229 = sbr.rel (%p227) target = $region16
        $region15: #{tpu_custom_call.1} parent=11 // pred_region
          %231 = vsyncadd [#allocation8], 0
          %s232 = smul.addr %s32, 2
          %s233 = smul.addr %s232, 4
          %s234 = scalar_lea.hbm %s2, %s233
          %s236 = sshll.u32 %s234, 4
          %s237 = int_to_ptr.hbm [resolvable:$true] %s236
          %s238 = sshll.u32 [#allocation9], 4
          %s239 = int_to_ptr.vmem [resolvable:$true] %s238
          %241 = dma.hbm_to_vmem [thread:$0]  %s237, 128, %s239, [#allocation8]
        $region16: #{tpu_custom_call.1} parent=11 // pred_fallthru
          _
      $region12: #{tpu_custom_call.1} parent=5 // pred_fallthru
        _
      %p242 = scmp.lt.s32.totalorder %s21, 4
      // Predicated region
      $region17: #{tpu_custom_call.1} parent=5 // pred_check
        %p243 = pneg %p242
      $region18: #{tpu_custom_call.1} parent=5 // pred_check_branch
        %245 = sbr.rel (%p243) target = $region20
      $region19: #{tpu_custom_call.1} parent=5 // pred_region
        // Predicated region
        $region21: #{tpu_custom_call.1} parent=19 // pred_check
          %p246 = pneg %p62
        $region22: #{tpu_custom_call.1} parent=19 // pred_check_branch
          %248 = sbr.rel (%p246) target = $region24
        $region23: #{tpu_custom_call.1} parent=19 // pred_region
          %s249 = sand.u32 %s52, 1
          %s250 = scalar_lea.sflag [#allocation5], %s249
          %s251 = sand.u32 %s52, 1
          %s252 = smul.addr %s251, 16
          %s253 = scalar_lea.vmem [#allocation4], %s252
          %s254 = smul.u32 2, %s30
          %256 = vsyncadd %s250, 0
          %s257 = smul.addr %s28, 12
          %s258 = sadd.s32 %s254, %s257
          %s259 = smul.addr %s258, 4
          %s260 = scalar_lea.hbm %s0, %s259
          %s261 = sshll.u32 %s260, 4
          %s262 = int_to_ptr.hbm [resolvable:$true] %s261
          %s263 = sshll.u32 %s253, 4
          %s264 = int_to_ptr.vmem [resolvable:$true] %s263
          %269 = dma.hbm_to_vmem [thread:$0]  %s262, 256, %s264, %s250, 384, 128, 8
        $region24: #{tpu_custom_call.1} parent=19 // pred_fallthru
          _
        // Predicated region
        $region25: #{tpu_custom_call.1} parent=19 // pred_check
          %p270 = pneg %p94
        $region26: #{tpu_custom_call.1} parent=19 // pred_check_branch
          %272 = sbr.rel (%p270) target = $region28
        $region27: #{tpu_custom_call.1} parent=19 // pred_region
          %s273 = sand.u32 %s21, 1
          %s274 = scalar_lea.sflag [#allocation8], %s273
          %s275 = sand.u32 %s84, 1
          %s276 = smul.addr %s275, 8
          %s277 = scalar_lea.vmem [#allocation7], %s276
          %s278 = sadd.s32 %s30, 1
          %s279 = smul.u32 %s278, 2
          %281 = vsyncadd %s274, 0
          %s282 = smul.addr %s28, 12
          %s283 = sadd.s32 %s279, %s282
          %s284 = smul.addr %s283, 4
          %s285 = scalar_lea.hbm %s1, %s284
          %s286 = sshll.u32 %s285, 4
          %s287 = int_to_ptr.hbm [resolvable:$true] %s286
          %s288 = sshll.u32 %s277, 4
          %s289 = int_to_ptr.vmem [resolvable:$true] %s288
          %294 = dma.hbm_to_vmem [thread:$0]  %s287, 128, %s289, %s274, 384, 64, 4
        $region28: #{tpu_custom_call.1} parent=19 // pred_fallthru
          _
      $region20: #{tpu_custom_call.1} parent=5 // pred_fallthru
        _
      %p295 = scmp.le.s32.totalorder 1, %s21
      %p296 = scmp.lt.s32.totalorder %s21, 5
      %p297 = pnand %p295, %p296
      %p298 = pneg %p297
      // Predicated region
      $region29: #{tpu_custom_call.1} parent=5 // pred_check
        _
      $region30: #{tpu_custom_call.1} parent=5 // pred_check_branch
        %300 = sbr.rel (%p297) target = $region32
      $region31: #{tpu_custom_call.1} parent=5 // pred_region
        %s301 = ssub.s32 %s21, 1
        %s302 = sand.u32 %s55, 1
        %s303 = scalar_lea.sflag [#allocation5], %s302
        %s304 = sand.u32 %s55, 1
        %s305 = smul.addr %s304, 16
        %s306 = scalar_lea.vmem [#allocation4], %s305
        // Predicated region
        $region33: #{tpu_custom_call.1} parent=31 // pred_check
          %p307 = pneg %p68
        $region34: #{tpu_custom_call.1} parent=31 // pred_check_branch
          %309 = sbr.rel (%p307) target = $region36
        $region35: #{tpu_custom_call.1} parent=31 // pred_region
          %311 = dma.done %s303, 256
        $region36: #{tpu_custom_call.1} parent=31 // pred_fallthru
          _
        %s312 = sand.u32 %s26, 1
        %s313 = scalar_lea.sflag [#allocation8], %s312
        %s314 = sand.u32 %s87, 1
        %s315 = smul.addr %s314, 8
        %s316 = scalar_lea.vmem [#allocation7], %s315
        // Predicated region
        $region37: #{tpu_custom_call.1} parent=31 // pred_check
          %p317 = pneg %p100
        $region38: #{tpu_custom_call.1} parent=31 // pred_check_branch
          %319 = sbr.rel (%p317) target = $region40
        $region39: #{tpu_custom_call.1} parent=31 // pred_region
          %321 = dma.done %s313, 128
        $region40: #{tpu_custom_call.1} parent=31 // pred_fallthru
          _
        // Predicated region
        $region41: #{tpu_custom_call.1} parent=31 // pred_check
          %p322 = pneg %p126
        $region42: #{tpu_custom_call.1} parent=31 // pred_check_branch
          %324 = sbr.rel (%p322) target = $region44
        $region43: #{tpu_custom_call.1} parent=31 // pred_region
          %326 = dma.done [#allocation8], 128
        $region44: #{tpu_custom_call.1} parent=31 // pred_fallthru
          _
        %s327 = sand.u32 %s55, 1
        %s328 = scalar_lea.sflag [#allocation5], %s327
        %s329 = sand.u32 %s55, 1
        %s330 = smul.addr %s329, 16
        %s331 = scalar_lea.vmem [#allocation4], %s330
        %p332 = pneg %p68
        %p333 = pneg %p65
        %s334 = sand.u32 %s26, 1
        %s335 = scalar_lea.sflag [#allocation8], %s334
        %s336 = sand.u32 %s87, 1
        %s337 = smul.addr %s336, 8
        %s338 = scalar_lea.vmem [#allocation7], %s337
        %p339 = pneg %p100
        %p340 = pneg %p97
        %p341 = pneg %p126
        %p342 = pneg %p123
        %p343 = pneg %p156
        %p344 = pneg %p153
        %s345 = sand.u32 %s143, 1
        %s346 = scalar_lea.sflag [#allocation6], %s345
        %s347 = sand.u32 %s143, 1
        %s348 = smul.addr %s347, 8
        %s349 = scalar_lea.vmem [#allocation10], %s348
        %p350 = pneg %p184
        %p351 = pneg %p181
        %p352 = scmp.lt.s32.totalorder %s31, 1
        %s353 = scalar_select %p352, %s31, 1
        %p354 = scmp.lt.s32.totalorder %s32, 0
        %s355 = scalar_select %p354, %s32, 0
        %s356 = sadd.s32 %s355, %s353
        %s357 = smul.addr %s356, 8
        %s358 = scalar_lea.vmem %s4, %s357
        %p359 = pneg %p212
        %p360 = pneg %p209
        %p361 = scmp.lt.s32.totalorder %s31, 1
        %s362 = scalar_select %p361, %s31, 1
        %p363 = scmp.lt.s32.totalorder %s32, 0
        %s364 = scalar_select %p363, %s32, 0
        %s365 = sadd.s32 %s364, %s362
        %s366 = smul.addr %s365, 8
        %s367 = scalar_lea.vmem %s5, %s366
        %s368 = smul.u32 2, %s33
        %s369 = sadd.s32 %s33, 1
        %s370 = smul.u32 %s369, 2
        %s371 = smul.u32 2, %s33
        %p372 = scmp.lt.s32.totalorder %s31, 1
        %s373 = scalar_select %p372, %s31, 1
        %p374 = scmp.lt.s32.totalorder %s32, 0
        %s375 = scalar_select %p374, %s32, 0
        %s376 = sadd.s32 %s375, %s373
        %s377 = smul.addr %s376, 8
        %s378 = scalar_lea.vmem %s4, %s377
        %p379 = scmp.lt.s32.totalorder %s31, 1
        %s380 = scalar_select %p379, %s31, 1
        %p381 = scmp.lt.s32.totalorder %s32, 0
        %s382 = scalar_select %p381, %s32, 0
        %s383 = sadd.s32 %s382, %s380
        %s384 = smul.addr %s383, 8
        %s385 = scalar_lea.vmem %s5, %s384
        %p386 = scmp.eq.s32.totalorder %s33, 0
        // Predicated region
        $region45: #{tpu_custom_call.1} parent=31 // pred_check
          %p387 = pneg %p386
        $region46: #{tpu_custom_call.1} parent=31 // pred_check_branch
          %389 = sbr.rel (%p387) target = $region48
        $region47: #{tpu_custom_call.1} parent=31 // pred_region
          %vm390 = vcmask 7168
          %391 = vst.msk [vmem:[#allocation2] sm:$0xff] %vm390, 0.0
          %392 = vst.msk [vmem:[#allocation3] sm:$0xff] %vm390, 0.0
        $region48: #{tpu_custom_call.1} parent=31 // pred_fallthru
          _
        %v393 = vld [vmem:[%s306] sm:$0xff]
        %v394 = vld [vmem:[%s306 + $0x8] sm:$0xff]
        %v395 = vld [vmem:[%s316] sm:$0xf]
        %v396 = vld [vmem:[%s316 + $0x4] sm:$0xf]
        %v399 = vunpack.c.l.b16 %v393
        %v400 = vunpack.c.h.b16 %v393
        %v401 = vunpack.c.l.b16 %v394
        %v402 = vunpack.c.h.b16 %v394
        %v403 = vpack.c.b16 %v401, %v399
        %v404 = vpack.c.b16 %v402, %v400
        %v409 = vunpack.c.l.b16 %v395
        %v410 = vunpack.c.l.b16 %v396
        %v411 = vpack.c.b16 %v410, %v409
        %412 = vrot.lane.b32.xlu0 %v403, 127
        %v413 = vpop.permute.xlu0 %412
        %414 = vrot.lane.b32.xlu0 %v404, 127
        %v415 = vpop.permute.xlu0 %414
        %416 = vrot.lane.b32.xlu0 %v411, 127
        %v417 = vpop.permute.xlu0 %416
        %vm418 = vcmask 1039360
        %v419 = vsel %vm418, %v413, %v415
        %v420 = vsel %vm418, %v415, %v417
        %423 = vrot.lane.b32.xlu0 %v403, 126
        %v424 = vpop.permute.xlu0 %423
        %425 = vrot.lane.b32.xlu0 %v404, 126
        %v426 = vpop.permute.xlu0 %425
        %427 = vrot.lane.b32.xlu0 %v411, 126
        %v428 = vpop.permute.xlu0 %427
        %vm429 = vcmask 1031168
        %v430 = vsel %vm429, %v424, %v426
        %v431 = vsel %vm429, %v426, %v428
        %434 = vrot.lane.b32.xlu0 %v403, 125
        %v435 = vpop.permute.xlu0 %434
        %436 = vrot.lane.b32.xlu0 %v404, 125
        %v437 = vpop.permute.xlu0 %436
        %438 = vrot.lane.b32.xlu0 %v411, 125
        %v439 = vpop.permute.xlu0 %438
        %vm440 = vcmask 1022976
        %v441 = vsel %vm440, %v435, %v437
        %v442 = vsel %vm440, %v437, %v439
        %445 = vrot.lane.b32.xlu0 %v403, 110
        %v446 = vpop.permute.xlu0 %445
        %447 = vrot.lane.b32.xlu0 %v404, 110
        %v448 = vpop.permute.xlu0 %447
        %449 = vrot.lane.b32.xlu0 %v411, 110
        %v450 = vpop.permute.xlu0 %449
        %vm451 = vcmask 900096
        %v452 = vsel %vm451, %v446, %v448
        %v453 = vsel %vm451, %v448, %v450
        %456 = vrot.lane.b32.xlu0 %v403, 109
        %v457 = vpop.permute.xlu0 %456
        %458 = vrot.lane.b32.xlu0 %v404, 109
        %v459 = vpop.permute.xlu0 %458
        %460 = vrot.lane.b32.xlu0 %v411, 109
        %v461 = vpop.permute.xlu0 %460
        %vm462 = vcmask 891904
        %v463 = vsel %vm462, %v457, %v459
        %v464 = vsel %vm462, %v459, %v461
        %467 = vrot.lane.b32.xlu0 %v403, 108
        %v468 = vpop.permute.xlu0 %467
        %469 = vrot.lane.b32.xlu0 %v404, 108
        %v470 = vpop.permute.xlu0 %469
        %471 = vrot.lane.b32.xlu0 %v411, 108
        %v472 = vpop.permute.xlu0 %471
        %vm473 = vcmask 883712
        %v474 = vsel %vm473, %v468, %v470
        %v475 = vsel %vm473, %v470, %v472
        %478 = vrot.lane.b32.xlu0 %v403, 107
        %v479 = vpop.permute.xlu0 %478
        %480 = vrot.lane.b32.xlu0 %v404, 107
        %v481 = vpop.permute.xlu0 %480
        %482 = vrot.lane.b32.xlu0 %v411, 107
        %v483 = vpop.permute.xlu0 %482
        %vm484 = vcmask 875520
        %v485 = vsel %vm484, %v479, %v481
        %v486 = vsel %vm484, %v481, %v483
        %489 = vrot.lane.b32.xlu0 %v403, 92
        %v490 = vpop.permute.xlu0 %489
        %491 = vrot.lane.b32.xlu0 %v404, 92
        %v492 = vpop.permute.xlu0 %491
        %493 = vrot.lane.b32.xlu0 %v411, 92
        %v494 = vpop.permute.xlu0 %493
        %vm495 = vcmask 752640
        %v496 = vsel %vm495, %v490, %v492
        %v497 = vsel %vm495, %v492, %v494
        %500 = vrot.lane.b32.xlu0 %v403, 91
        %v501 = vpop.permute.xlu0 %500
        %502 = vrot.lane.b32.xlu0 %v404, 91
        %v503 = vpop.permute.xlu0 %502
        %504 = vrot.lane.b32.xlu0 %v411, 91
        %v505 = vpop.permute.xlu0 %504
        %vm506 = vcmask 744448
        %v507 = vsel %vm506, %v501, %v503
        %v508 = vsel %vm506, %v503, %v505
        %511 = vrot.lane.b32.xlu0 %v403, 90
        %v512 = vpop.permute.xlu0 %511
        %513 = vrot.lane.b32.xlu0 %v404, 90
        %v514 = vpop.permute.xlu0 %513
        %515 = vrot.lane.b32.xlu0 %v411, 90
        %v516 = vpop.permute.xlu0 %515
        %vm517 = vcmask 736256
        %v518 = vsel %vm517, %v512, %v514
        %v519 = vsel %vm517, %v514, %v516
        %522 = vrot.lane.b32.xlu0 %v403, 89
        %v523 = vpop.permute.xlu0 %522
        %524 = vrot.lane.b32.xlu0 %v404, 89
        %v525 = vpop.permute.xlu0 %524
        %526 = vrot.lane.b32.xlu0 %v411, 89
        %v527 = vpop.permute.xlu0 %526
        %vm528 = vcmask 728064
        %v529 = vsel %vm528, %v523, %v525
        %v530 = vsel %vm528, %v525, %v527
        %533 = vrot.lane.b32.xlu0 %v403, 74
        %v534 = vpop.permute.xlu0 %533
        %535 = vrot.lane.b32.xlu0 %v404, 74
        %v536 = vpop.permute.xlu0 %535
        %537 = vrot.lane.b32.xlu0 %v411, 74
        %v538 = vpop.permute.xlu0 %537
        %vm539 = vcmask 605184
        %v540 = vsel %vm539, %v534, %v536
        %v541 = vsel %vm539, %v536, %v538
        %544 = vrot.lane.b32.xlu0 %v403, 73
        %v545 = vpop.permute.xlu0 %544
        %546 = vrot.lane.b32.xlu0 %v404, 73
        %v547 = vpop.permute.xlu0 %546
        %548 = vrot.lane.b32.xlu0 %v411, 73
        %v549 = vpop.permute.xlu0 %548
        %vm550 = vcmask 596992
        %v551 = vsel %vm550, %v545, %v547
        %v552 = vsel %vm550, %v547, %v549
        %555 = vrot.lane.b32.xlu0 %v403, 72
        %v556 = vpop.permute.xlu0 %555
        %557 = vrot.lane.b32.xlu0 %v404, 72
        %v558 = vpop.permute.xlu0 %557
        %559 = vrot.lane.b32.xlu0 %v411, 72
        %v560 = vpop.permute.xlu0 %559
        %vm561 = vcmask 588800
        %v562 = vsel %vm561, %v556, %v558
        %v563 = vsel %vm561, %v558, %v560
        %566 = vrot.lane.b32.xlu0 %v403, 71
        %v567 = vpop.permute.xlu0 %566
        %568 = vrot.lane.b32.xlu0 %v404, 71
        %v569 = vpop.permute.xlu0 %568
        %570 = vrot.lane.b32.xlu0 %v411, 71
        %v571 = vpop.permute.xlu0 %570
        %vm572 = vcmask 580608
        %v573 = vsel %vm572, %v567, %v569
        %v574 = vsel %vm572, %v569, %v571
        %v577 = vld [vmem:[#allocation9] sm:$0xff]
        %v579 = vunpack.c.l.b16 %v577
        %v580 = vunpack.c.h.b16 %v577
        %v581 = vpack.c.b16 %v579, %v579
        %v582 = vpack.c.b16 %v580, %v580
        %585 = vmatpush.bf16.msra.mxu0 %v485
        %586 = vmatpush.bf16.msra.mxu0 %v474
        %587 = vmatpush.bf16.msra.mxu0 %v463
        %588 = vmatpush.bf16.msra.mxu0 %v452
        %589 = vmatpush.bf16.msra.mxu0 %v441
        %590 = vmatpush.bf16.msra.mxu0 %v430
        %591 = vmatpush.bf16.msra.mxu0 %v419
        %592 = vmatpush.bf16.msra.mxu0 %v403
        %593 = vmatmul.bf16.gmra.mxu0 %v581
        %v594 = vpop.f32.mrf.mxu0
        %v595 = vadd.f32 0.0, %v594
        %v596 = vpop.f32.mrf.mxu0
        %597 = vdwg.mxu0
        %598 = vmatpush.bf16.msra.mxu0 %v573
        %599 = vmatpush.bf16.msra.mxu0 %v562
        %600 = vmatpush.bf16.msra.mxu0 %v551
        %601 = vmatpush.bf16.msra.mxu0 %v540
        %602 = vmatpush.bf16.msra.mxu0 %v529
        %603 = vmatpush.bf16.msra.mxu0 %v518
        %604 = vmatpush.bf16.msra.mxu0 %v507
        %605 = vmatpush.bf16.msra.mxu0 %v496
        %606 = vmatmul.bf16.gmra.mxu0 %v582
        %v607 = vpop.f32.mrf.mxu0
        %v608 = vadd.f32 %v595, %v607
        %v609 = vpop.f32.mrf.mxu0
        %610 = vdwg.mxu0
        %611 = vmatpush.bf16.msra.mxu0 %v486
        %612 = vmatpush.bf16.msra.mxu0 %v475
        %613 = vmatpush.bf16.msra.mxu0 %v464
        %614 = vmatpush.bf16.msra.mxu0 %v453
        %615 = vmatpush.bf16.msra.mxu0 %v442
        %616 = vmatpush.bf16.msra.mxu0 %v431
        %617 = vmatpush.bf16.msra.mxu0 %v420
        %618 = vmatpush.bf16.msra.mxu0 %v404
        %619 = vmatmul.bf16.gmra.mxu0 %v581
        %v620 = vpop.f32.mrf.mxu0
        %v621 = vadd.f32 0.0, %v620
        %v622 = vpop.f32.mrf.mxu0
        %623 = vdwg.mxu0
        %624 = vmatpush.bf16.msra.mxu0 %v574
        %625 = vmatpush.bf16.msra.mxu0 %v563
        %626 = vmatpush.bf16.msra.mxu0 %v552
        %627 = vmatpush.bf16.msra.mxu0 %v541
        %628 = vmatpush.bf16.msra.mxu0 %v530
        %629 = vmatpush.bf16.msra.mxu0 %v519
        %630 = vmatpush.bf16.msra.mxu0 %v508
        %631 = vmatpush.bf16.msra.mxu0 %v497
        %632 = vmatmul.bf16.gmra.mxu0 %v582
        %v633 = vpop.f32.mrf.mxu0
        %v634 = vadd.f32 %v621, %v633
        %v635 = vpop.f32.mrf.mxu0
        %636 = vdwg.mxu0
        %v637 = vpack.c.bf16 %v634, %v608
        %638 = vst [vmem:[%s349] sm:$0xff] %v637
        %s639 = smul.u32 %s33, 256
        %v640 = vlaneseq
        %v641 = vand.u32 %v640, 127
        %v642 = vadd.s32 %v641, 128
        %v643 = vstv %s639
        %v644 = vadd.s32 %v643, %v641
        %v645 = vadd.s32 %v643, %v642
        %vm646 = vcmp.lt.s32.totalorder %v644, 0
        %v647 = vsub.s32 0, %v644
        %v648 = vsel %vm646, %v647, %v644
        %v649 = vand.u32 %v648, 65535
        %v650 = vshrl.u32 %v648, 16
        %v652 = vmul.u32 %v649, 14564
        %v653 = vmul.u32 %v649, 58254
        %v654 = vmul.u32 %v650, 14564
        %v655 = vmul.u32 %v650, 58254
        %v656 = vshll.u32 %v653, 16
        %v657 = vshrl.u32 %v653, 16
        %v658 = vshll.u32 %v654, 16
        %v659 = vshrl.u32 %v654, 16
        %vm660 = vc.u32 %v652, %v656
        %v661 = vsel %vm660, 1, 0
        %v662 = vadd.s32 %v652, %v656
        %v663 = vadd.s32 %v655, %v661
        %vm664 = vc.u32 %v662, %v658
        %v665 = vsel %vm664, 1, 0
        %v666 = vadd.s32 %v662, %v658
        %v667 = vadd.s32 %v663, %v665
        %v668 = vadd.s32 %v667, %v657
        %v669 = vadd.s32 %v668, %v659
        %v670 = vshrl.u32 %v669, 4
        %v671 = vmul.u32 %v670, 18
        %v672 = vsub.s32 %v648, %v671
        %v673 = vsub.s32 0, %v672
        %v674 = vsel %vm646, %v673, %v672
        %vm675 = vcmp.lt.s32.totalorder %v645, 0
        %v676 = vsub.s32 0, %v645
        %v677 = vsel %vm675, %v676, %v645
        %v678 = vand.u32 %v677, 65535
        %v679 = vshrl.u32 %v677, 16
        %v681 = vmul.u32 %v678, 14564
        %v682 = vmul.u32 %v678, 58254
        %v683 = vmul.u32 %v679, 14564
        %v684 = vmul.u32 %v679, 58254
        %v685 = vshll.u32 %v682, 16
        %v686 = vshrl.u32 %v682, 16
        %v687 = vshll.u32 %v683, 16
        %v688 = vshrl.u32 %v683, 16
        %vm689 = vc.u32 %v681, %v685
        %v690 = vsel %vm689, 1, 0
        %v691 = vadd.s32 %v681, %v685
        %v692 = vadd.s32 %v684, %v690
        %vm693 = vc.u32 %v691, %v687
        %v694 = vsel %vm693, 1, 0
        %v695 = vadd.s32 %v691, %v687
        %v696 = vadd.s32 %v692, %v694
        %v697 = vadd.s32 %v696, %v686
        %v698 = vadd.s32 %v697, %v688
        %v699 = vshrl.u32 %v698, 4
        %v700 = vmul.u32 %v699, 18
        %v701 = vsub.s32 %v677, %v700
        %v702 = vsub.s32 0, %v701
        %v703 = vsel %vm675, %v702, %v701
        %vm704 = vcmp.ne.s32.totalorder %v674, 0
        %vm705 = vcmp.ne.s32.totalorder %v703, 0
        %vm706 = vcmp.lt.s32.totalorder %v674, 0
        %vm707 = vcmp.lt.s32.totalorder %v703, 0
        %vm708 = vmand %vm706, %vm704
        %vm709 = vmand %vm707, %vm705
        %v710 = vadd.s32 %v674, 18
        %v711 = vadd.s32 %v703, 18
        %v712 = vsel %vm708, %v710, %v674
        %v713 = vsel %vm709, %v711, %v703
        %vm714 = vcmp.lt.s32.totalorder %v712, 15
        %vm715 = vcmp.lt.s32.totalorder %v713, 15
        %vm716 = vcmp.lt.s32.totalorder %v644, 270
        %vm717 = vcmp.lt.s32.totalorder %v645, 270
        %vm718 = vmand %vm714, %vm716
        %vm719 = vmand %vm715, %vm717
        %v720 = vsel %vm718, 1, 0
        %v721 = vsel %vm719, 1, 0
        %v722 = vcvt.s32.f32 %v720
        %v723 = vcvt.s32.f32 %v721
        %v724 = vmul.f32 %v608, %v722
        %v725 = vmul.f32 %v634, %v723
        %v726 = vld [vmem:[#allocation2] sm:$0xff]
        %v727 = vadd.f32 %v724, %v725
        %728 = vadd.xlane.f32.xlu0 %v727
        %v729 = vpop.xlane.xlu0 %728
        %v730 = vadd.f32 %v726, %v729
        %vm731 = vcmask 7168
        %732 = vst.msk [vmem:[#allocation2] sm:$0xff] %vm731, %v730
        %v733 = vld [vmem:[#allocation3] sm:$0xff]
        %v734 = vmul.f32 %v724, %v608
        %v735 = vmul.f32 %v725, %v634
        %v736 = vadd.f32 %v734, %v735
        %737 = vadd.xlane.f32.xlu0 %v736
        %v738 = vpop.xlane.xlu0 %737
        %v739 = vadd.f32 %v733, %v738
        %740 = vst.msk [vmem:[#allocation3] sm:$0xff] %vm731, %v739
        %p741 = scmp.eq.s32.totalorder %s33, 1
        // Predicated region
        $region49: #{tpu_custom_call.1} parent=31 // pred_check
          %p742 = pneg %p741
        $region50: #{tpu_custom_call.1} parent=31 // pred_check_branch
          %744 = sbr.rel (%p742) target = $region52
        $region51: #{tpu_custom_call.1} parent=31 // pred_region
          %v745 = vld [vmem:[#allocation2] sm:$0xff]
          %v746 = vrcp.pop 225.0
          %v747 = vmul.f32 225.0, %v746
          %v748 = vsub.f32 1.0, %v747
          %v749 = vmul.f32 %v746, %v748
          %v750 = vadd.f32 %v746, %v749
          %vm751 = vweird.f32 %v746
          %v752 = vsel %vm751, %v746, %v750
          %v753 = vmul.f32 %v745, %v752
          %v754 = vld [vmem:[#allocation3] sm:$0xff]
          %v755 = vmul.f32 %v754, %v752
          %v756 = vmul.f32 %v753, %v753
          %v757 = vsub.f32 %v755, %v756
          %v758 = vmax.f32 %v757, 0.0
          %759 = vst.msk [vmem:[%s378] sm:$0xff] %vm731, %v753
          %v760 = vadd.f32 %v758, 1e-05
          %v761 = vrsqrt.pop %v760
          %v762 = vmul.f32 %v761, %v760
          %v763 = vmul.f32 %v762, %v761
          %v764 = vmul.f32 0.5, %v763
          %v765 = vsub.f32 1.5, %v764
          %v766 = vmul.f32 %v761, %v765
          %vm767 = vweird.f32 %v760
          %vm768 = vweird.f32 %v761
          %vm769 = vmor %vm767, %vm768
          %v770 = vsel %vm769, %v761, %v766
          %771 = vst.msk [vmem:[%s385] sm:$0xff] %vm731, %v770
        $region52: #{tpu_custom_call.1} parent=31 // pred_fallthru
          _
        %s772 = sand.u32 %s143, 1
        %s773 = scalar_lea.sflag [#allocation6], %s772
        %s774 = sand.u32 %s143, 1
        %s775 = smul.addr %s774, 8
        %s776 = scalar_lea.vmem [#allocation10], %s775
        %p777 = scmp.lt.s32.totalorder %s31, 1
        %s778 = scalar_select %p777, %s31, 1
        %p779 = scmp.lt.s32.totalorder %s32, 0
        %s780 = scalar_select %p779, %s32, 0
        %s781 = sadd.s32 %s780, %s778
        %s782 = smul.addr %s781, 8
        %s783 = scalar_lea.vmem %s4, %s782
        %p784 = scmp.lt.s32.totalorder %s31, 1
        %s785 = scalar_select %p784, %s31, 1
        %p786 = scmp.lt.s32.totalorder %s32, 0
        %s787 = scalar_select %p786, %s32, 0
        %s788 = sadd.s32 %s787, %s785
        %s789 = smul.addr %s788, 8
        %s790 = scalar_lea.vmem %s5, %s789
        // Predicated region
        $region53: #{tpu_custom_call.1} parent=31 // pred_check
          %p791 = pneg %p153
        $region54: #{tpu_custom_call.1} parent=31 // pred_check_branch
          %793 = sbr.rel (%p791) target = $region56
        $region55: #{tpu_custom_call.1} parent=31 // pred_region
          %s794 = smul.u32 2, %s33
          %796 = vsyncadd %s773, 0
          %s797 = smul.addr %s32, 4
          %s798 = sadd.s32 %s794, %s797
          %s799 = smul.addr %s31, 4
          %s800 = sadd.s32 %s798, %s799
          %s801 = smul.addr %s800, 4
          %s802 = scalar_lea.hbm %s3, %s801
          %s804 = sshll.u32 %s776, 4
          %s805 = int_to_ptr.vmem [resolvable:$true] %s804
          %s806 = sshll.u32 %s802, 4
          %s807 = int_to_ptr.hbm [resolvable:$true] %s806
          %809 = dma.vmem_to_hbm [thread:$0]  %s805, 128, %s807, %s773
        $region56: #{tpu_custom_call.1} parent=31 // pred_fallthru
          _
        // Predicated region
        $region57: #{tpu_custom_call.1} parent=31 // pred_check
          %p810 = pneg %p181
        $region58: #{tpu_custom_call.1} parent=31 // pred_check_branch
          %812 = sbr.rel (%p810) target = $region60
        $region59: #{tpu_custom_call.1} parent=31 // pred_region
          _
        $region60: #{tpu_custom_call.1} parent=31 // pred_fallthru
          _
        // Predicated region
        $region61: #{tpu_custom_call.1} parent=31 // pred_check
          %p813 = pneg %p209
        $region62: #{tpu_custom_call.1} parent=31 // pred_check_branch
          %815 = sbr.rel (%p813) target = $region64
        $region63: #{tpu_custom_call.1} parent=31 // pred_region
          _
        $region64: #{tpu_custom_call.1} parent=31 // pred_fallthru
          _
      $region32: #{tpu_custom_call.1} parent=5 // pred_fallthru
        _
      %p816 = scmp.le.s32.totalorder 2, %s21
      // Predicated region
      $region65: #{tpu_custom_call.1} parent=5 // pred_check
        %p817 = pneg %p816
      $region66: #{tpu_custom_call.1} parent=5 // pred_check_branch
        %819 = sbr.rel (%p817) target = $region68
      $region67: #{tpu_custom_call.1} parent=5 // pred_region
        %s820 = ssub.s32 %s21, 2
        // Predicated region
        $region69: #{tpu_custom_call.1} parent=67 // pred_check
          %p821 = pneg %p159
        $region70: #{tpu_custom_call.1} parent=67 // pred_check_branch
          %823 = sbr.rel (%p821) target = $region72
        $region71: #{tpu_custom_call.1} parent=67 // pred_region
          %s824 = sand.u32 %s144, 1
          %s825 = scalar_lea.sflag [#allocation6], %s824
          %s826 = sand.u32 %s144, 1
          %s827 = smul.addr %s826, 8
          %s828 = scalar_lea.vmem [#allocation10], %s827
          %830 = dma.done %s825, 128
        $region72: #{tpu_custom_call.1} parent=67 // pred_fallthru
          _
        // Predicated region
        $region73: #{tpu_custom_call.1} parent=67 // pred_check
          %p831 = pneg %p187
        $region74: #{tpu_custom_call.1} parent=67 // pred_check_branch
          %833 = sbr.rel (%p831) target = $region76
        $region75: #{tpu_custom_call.1} parent=67 // pred_region
          %p834 = scmp.lt.s32.totalorder %s34, 1
          %s835 = scalar_select %p834, %s34, 1
          %p836 = scmp.lt.s32.totalorder %s35, 0
          %s837 = scalar_select %p836, %s35, 0
          %s838 = sadd.s32 %s837, %s835
          %s839 = smul.addr %s838, 8
          %s840 = scalar_lea.vmem %s4, %s839
        $region76: #{tpu_custom_call.1} parent=67 // pred_fallthru
          _
        // Predicated region
        $region77: #{tpu_custom_call.1} parent=67 // pred_check
          %p841 = pneg %p215
        $region78: #{tpu_custom_call.1} parent=67 // pred_check_branch
          %843 = sbr.rel (%p841) target = $region80
        $region79: #{tpu_custom_call.1} parent=67 // pred_region
          %p844 = scmp.lt.s32.totalorder %s34, 1
          %s845 = scalar_select %p844, %s34, 1
          %p846 = scmp.lt.s32.totalorder %s35, 0
          %s847 = scalar_select %p846, %s35, 0
          %s848 = sadd.s32 %s847, %s845
          %s849 = smul.addr %s848, 8
          %s850 = scalar_lea.vmem %s5, %s849
        $region80: #{tpu_custom_call.1} parent=67 // pred_fallthru
          _
      $region68: #{tpu_custom_call.1} parent=5 // pred_fallthru
        _
    $region6: #{tpu_custom_call.1} parent=1 // loop_footer
      %s25 = sadd.s32 1, %s21
    $region7: #{tpu_custom_call.1} parent=1 // loop_footer_branch
      %20 = sbr.rel target = $region3
    $region8: #{tpu_custom_call.1} parent=1 // loop_exit
      _
    %851 = vsyncpa [#allocation5], 1
    %s852 = scalar_lea.sflag [#allocation5], 1
    %853 = vsyncpa %s852, 1
    %854 = vsyncpa [#allocation8], 1
    %s855 = scalar_lea.sflag [#allocation8], 1
    %856 = vsyncpa %s855, 1
    %857 = vsyncpa [#allocation6], 1
    %s858 = scalar_lea.sflag [#allocation6], 1
    %859 = vsyncpa %s858, 1

</llo_original>
